<compile_context>
chip_gen: v7x
topology: tpu7x:2x2x1
jax: 0.10.0
libtpu: 0.0.40
codegen_flags: <defaults>
</compile_context>

<pallas_src>
import functools

import jax
import jax.numpy as jnp
from jax.experimental import pallas as pl
from jax.experimental.pallas import tpu as pltpu

_PACK_WIDTH = 128  # lane-dense packed output width for (weights, indices)


def _round_up(x, m):
    return (x + m - 1) // m * m


def _vmem_capacity_bytes():
    try:
        return int(pltpu.get_tpu_info().vmem_capacity_bytes)
    except Exception:
        return 64 << 20  # conservative (v7x physical VMEM per TensorCore)


def _router_kernel(x_ref, w_ref, *out_refs, num_experts: int, k: int,
                   compute_dtype, emit_logits: bool):
    """One token tile.

    x_ref:    (TT, H)      native dtype (cast to compute_dtype in-kernel)
    w_ref:    (H, E_pad)   compute_dtype (expert axis zero-padded to 128 lanes)
    out_refs: [(TT, E_pad) f32 logits,]  (TT, 128) f32 packed
              packed lanes [0,k)=normalized weights, [k,2k)=indices.
    """
    if emit_logits:
        logits_ref, packed_ref = out_refs
    else:
        (packed_ref,) = out_refs

    x = x_ref[...].astype(compute_dtype)
    w = w_ref[...]

    # Router logits (MXU, f32 accumulate). Padded expert columns are exactly 0
    # because the corresponding weight rows are 0.
    logits = jnp.dot(x, w, preferred_element_type=jnp.float32)
    if emit_logits:
        logits_ref[...] = logits

    tt, e_pad = logits.shape
    expert_iota = jax.lax.broadcasted_iota(jnp.int32, (tt, e_pad), 1)
    neg_inf = jnp.float32(-jnp.inf)

    # Top-k directly on the (masked) logits: exp is monotonic, and the full
    # softmax denominator cancels against the final top-k renormalization.
    if num_experts == e_pad:
        p = logits
    else:
        p = jnp.where(expert_iota < num_experts, logits, neg_inf)

    # Iterative top-k (k small & static), lowest-index tie-break
    # (matches torch.topk sorted / first-occurrence behavior).
    vals, sels = [], []
    for _ in range(k):
        v = jnp.max(p, axis=-1, keepdims=True)                       # (TT, 1)
        sel = jnp.min(jnp.where(p == v, expert_iota, e_pad),
                      axis=-1, keepdims=True)                        # (TT, 1)
        vals.append(v)
        sels.append(sel)
        p = jnp.where(expert_iota == sel, neg_inf, p)

    # Softmax over just the k selected logits == renormalized top-k probs.
    m = vals[0]                                       # top-1 logit == row max
    ws = [jnp.exp(v - m) for v in vals]               # only tile*k exps
    denom = ws[0]
    for w_j in ws[1:]:
        denom = denom + w_j
    inv = pl.reciprocal(denom, approx=False)          # exact, matches torch div

    # Lane-dense packing: full-width selects into the (TT, 128) slab,
    # no narrow-array concatenates.
    lane = jax.lax.broadcasted_iota(jnp.int32, (tt, _PACK_WIDTH), 1)
    packed = jnp.zeros((tt, _PACK_WIDTH), jnp.float32)
    for j in range(k):
        packed = jnp.where(lane == j, ws[j] * inv, packed)
        packed = jnp.where(lane == k + j, sels[j].astype(jnp.float32), packed)
    packed_ref[...] = packed


def topk_router_forward(hidden_states, router_weight, num_selected_experts,
                        token_tile=1024, vmem_budget_bytes=None,
                        compute_dtype=jnp.bfloat16, return_router_logits=True):
    """Pallas implementation of TopKRouter.forward (training=False).

    hidden_states: [B, S, H]
    router_weight: [E, H]   (nn.Linear weight layout)

    Returns (expert_weights [T,k] f32, expert_indices [T,k] i32,
             router_logits [T,E] f32 (or None), aux_loss_dict {}).
    """
    B, S, H = hidden_states.shape
    E, H2 = router_weight.shape
    assert H == H2
    k = int(num_selected_experts)
    assert 1 <= k <= E and 2 * k <= _PACK_WIDTH

    T = B * S
    E_pad = _round_up(max(E, _PACK_WIDTH), _PACK_WIDTH)
    in_itemsize = jnp.dtype(hidden_states.dtype).itemsize
    w_itemsize = jnp.dtype(compute_dtype).itemsize

    vmem_cap = _vmem_capacity_bytes()
    if vmem_budget_bytes is None:
        # Leave pipeline/compiler headroom: ~40 MiB on v7x (64 MiB VMEM),
        # ~80 MiB on v5e/v6e (128 MiB VMEM).
        vmem_budget_bytes = (40 << 20) if vmem_cap <= (64 << 20) else (80 << 20)

    # --- tile selection: as big as possible within the VMEM budget.
    tile = max(8, min(_round_up(int(token_tile), 8), _round_up(T, 8)))

    def vmem_need(t):
        out_bytes = t * _PACK_WIDTH * 4
        if return_router_logits:
            out_bytes += t * E_pad * 4
        return (2 * t * H * in_itemsize      # x tile (double-buffered)
                + H * E_pad * w_itemsize     # W^T (block-invariant, counted once)
                + 2 * out_bytes)             # output tiles (double-buffered)

    while vmem_need(tile) > vmem_budget_bytes and tile > 8:
        tile = max(8, _round_up(tile // 2, 8))

    # v7x has 2 TensorCores: make sure the "parallel" grid axis has >= 2 steps.
    if pl.cdiv(T, tile) < 2 and tile > 8:
        tile = max(8, _round_up(pl.cdiv(T, 2), 8))

    grid = (pl.cdiv(T, tile),)   # ragged tail handled by Pallas (masked writes)

    # --- operand prep: only the tiny router weight is touched in the wrapper
    # (zero-pad expert axis to 128 lanes + transpose once). x is streamed in
    # its native dtype and cast inside the kernel (no extra HBM pass).
    x = hidden_states.reshape(T, H)
    w_t = jnp.zeros((E_pad, H), compute_dtype).at[:E].set(
        router_weight.astype(compute_dtype)).T                 # (H, E_pad)

    kernel = functools.partial(_router_kernel, num_experts=E, k=k,
                               compute_dtype=compute_dtype,
                               emit_logits=return_router_logits)

    out_shapes = [jax.ShapeDtypeStruct((T, _PACK_WIDTH), jnp.float32)]
    out_specs = [pl.BlockSpec((tile, _PACK_WIDTH), lambda i: (i, 0))]
    if return_router_logits:
        out_shapes.insert(0, jax.ShapeDtypeStruct((T, E_pad), jnp.float32))
        out_specs.insert(0, pl.BlockSpec((tile, E_pad), lambda i: (i, 0)))

    flops = 2 * T * H * E_pad
    bytes_accessed = (T * H * in_itemsize + H * E_pad * w_itemsize
                      + T * _PACK_WIDTH * 4
                      + (T * E_pad * 4 if return_router_logits else 0))

    outs = pl.pallas_call(
        kernel,
        out_shape=tuple(out_shapes),
        grid_spec=pltpu.PrefetchScalarGridSpec(
            num_scalar_prefetch=0,
            grid=grid,
            in_specs=[
                pl.BlockSpec((tile, H), lambda i: (i, 0)),    # x tile
                pl.BlockSpec((H, E_pad), lambda i: (0, 0)),   # W^T, block-invariant
            ],
            out_specs=out_specs,
        ),
        compiler_params=pltpu.CompilerParams(
            dimension_semantics=("parallel",),
            vmem_limit_bytes=min(vmem_need(tile) + (8 << 20),
                                 max(vmem_cap - (8 << 20), 32 << 20))),
        cost_estimate=pl.CostEstimate(flops=flops,
                                      transcendentals=T * k,
                                      bytes_accessed=bytes_accessed),
    )(x, w_t)

    if return_router_logits:
        logits_pad, packed = outs
        router_logits = logits_pad[:, :E]
    else:
        (packed,) = outs
        router_logits = None

    expert_weights = packed[:, :k]
    expert_indices = packed[:, k:2 * k].astype(jnp.int32)

    # TODO(synk): training-only paths (jitter noise, router_z_loss,
    # load_balancing_loss) are not implemented; inference returns {}.
    aux_loss_dict = {}
    return expert_weights, expert_indices, router_logits, aux_loss_dict


if __name__ == "__main__":
    batch_size, seq_len, hidden_size = 2, 8, 32
    num_experts, num_selected_experts = 8, 2

    key = jax.random.PRNGKey(0)
    k_x, k_w = jax.random.split(key)
    hidden_states = jax.random.normal(
        k_x, (batch_size, seq_len, hidden_size), dtype=jnp.float32)
    # nn.init.normal_(weight, mean=0.0, std=0.01), shape [num_experts, hidden]
    router_weight = 0.01 * jax.random.normal(
        k_w, (num_experts, hidden_size), dtype=jnp.float32)

    expert_weights, expert_indices, router_logits, aux = topk_router_forward(
        hidden_states, router_weight, num_selected_experts)
    jax.block_until_ready((expert_weights, expert_indices, router_logits))

    # Pure-JAX reference (same bf16 matmul inputs, f32 accumulation).
    x_bf = hidden_states.reshape(-1, hidden_size).astype(jnp.bfloat16)
    w_bf = router_weight.astype(jnp.bfloat16)
    ref_logits = jnp.dot(x_bf, w_bf.T, preferred_element_type=jnp.float32)
    ref_probs = jax.nn.softmax(ref_logits, axis=-1)
    ref_vals, ref_idx = jax.lax.top_k(ref_probs, num_selected_experts)
    ref_weights = ref_vals / ref_vals.sum(axis=-1, keepdims=True)

    T = batch_size * seq_len
    assert router_logits.shape == (T, num_experts)
    assert expert_weights.shape == (T, num_selected_experts)
    assert expert_indices.shape == (T, num_selected_experts)
    assert jnp.allclose(router_logits, ref_logits, atol=1e-3), "logits mismatch"
    assert jnp.allclose(expert_weights, ref_weights, atol=3e-3), "weights mismatch"
    assert jnp.array_equal(expert_indices, ref_idx), "indices mismatch"
    assert aux == {}

    print("KERNEL_OK")
</pallas_src>

<mosaic_0001>
module attributes {stable_mosaic.version = 11 : i64} {
  func.func @_router_kernel(%arg0: i32, %arg1: memref<8x32xf32, #tpu.memory_space<vmem>>, %arg2: memref<32x128xbf16, #tpu.memory_space<vmem>>, %arg3: memref<8x128xf32, #tpu.memory_space<vmem>>, %arg4: memref<8x128xf32, #tpu.memory_space<vmem>>) attributes {dimension_semantics = [#tpu.dimension_semantics<parallel>], iteration_bounds = array<i64: 2>, scalar_prefetch = 0 : i64, scratch_operands = 0 : i64, tpu.core_type = #tpu.core_type<tc>, window_params = [{transform_indices = @transform_0, window_bounds = array<i64: 8, 32>}, {pipeline_mode = #tpu.pipeline_mode<synchronous>, transform_indices = @transform_1, window_bounds = array<i64: 32, 128>}, {transform_indices = @transform_2, window_bounds = array<i64: 8, 128>}, {transform_indices = @transform_3, window_bounds = array<i64: 8, 128>}]} {
    %c0 = arith.constant 0 : index
    %c0_0 = arith.constant 0 : index
    %0 = vector.load %arg1[%c0, %c0_0] : memref<8x32xf32, #tpu.memory_space<vmem>>, vector<8x32xf32>
    %1 = arith.truncf %0 : vector<8x32xf32> to vector<8x32xbf16>
    %c0_1 = arith.constant 0 : index
    %c0_2 = arith.constant 0 : index
    %2 = vector.load %arg2[%c0_1, %c0_2] : memref<32x128xbf16, #tpu.memory_space<vmem>>, vector<32x128xbf16>
    %cst = arith.constant dense<0.000000e+00> : vector<8x128xf32>
    %3 = tpu.matmul %1, %2, %cst {dimension_numbers = #tpu.dot_dimension_numbers<[1], [0], [0], [1], [0, 0, 1, 1], [], []>} : vector<8x32xbf16>, vector<32x128xbf16>, vector<8x128xf32> -> vector<8x128xf32>
    %c0_3 = arith.constant 0 : index
    %c0_4 = arith.constant 0 : index
    %4 = vector.load %arg3[%c0_3, %c0_4] : memref<8x128xf32, #tpu.memory_space<vmem>>, vector<8x128xf32>
    tpu.vector_store %arg3[%c0_3, %c0_4], %3 {strides = array<i32>} : memref<8x128xf32, #tpu.memory_space<vmem>>, vector<8x128xf32>,
    %5 = tpu.iota {dimensions = array<i32: 1>} : vector<8x128xi32>
    %c8_i32 = arith.constant 8 : i32
    %6 = vector.broadcast %c8_i32 : i32 to vector<8x128xi32>
    %7 = arith.cmpi slt, %5, %6 : vector<8x128xi32>
    %cst_5 = arith.constant 0xFF800000 : f32
    %8 = vector.broadcast %cst_5 : f32 to vector<8x128xf32>
    %9 = arith.select %7, %3, %8 : vector<8x128xi1>, vector<8x128xf32>
    %cst_6 = arith.constant dense<0xFF800000> : vector<8xf32>
    %10 = vector.multi_reduction <maximumf>, %9, %cst_6 [1] : vector<8x128xf32> to vector<8xf32>
    %11 = vector.shape_cast %10 : vector<8xf32> to vector<8x1xf32>
    %12 = vector.broadcast %11 : vector<8x1xf32> to vector<8x128xf32>
    %13 = arith.cmpf oeq, %9, %12 : vector<8x128xf32>
    %c128_i32 = arith.constant 128 : i32
    %14 = vector.broadcast %c128_i32 : i32 to vector<8x128xi32>
    %15 = arith.select %13, %5, %14 : vector<8x128xi1>, vector<8x128xi32>
    %cst_7 = arith.constant dense<2147483647> : vector<8xi32>
    %16 = vector.multi_reduction <minsi>, %15, %cst_7 [1] : vector<8x128xi32> to vector<8xi32>
    %17 = vector.shape_cast %16 : vector<8xi32> to vector<8x1xi32>
    %18 = vector.broadcast %17 : vector<8x1xi32> to vector<8x128xi32>
    %19 = arith.cmpi eq, %5, %18 : vector<8x128xi32>
    %cst_8 = arith.constant 0xFF800000 : f32
    %20 = vector.broadcast %cst_8 : f32 to vector<8x128xf32>
    %21 = arith.select %19, %20, %9 : vector<8x128xi1>, vector<8x128xf32>
    %cst_9 = arith.constant dense<0xFF800000> : vector<8xf32>
    %22 = vector.multi_reduction <maximumf>, %21, %cst_9 [1] : vector<8x128xf32> to vector<8xf32>
    %23 = vector.shape_cast %22 : vector<8xf32> to vector<8x1xf32>
    %24 = vector.broadcast %23 : vector<8x1xf32> to vector<8x128xf32>
    %25 = arith.cmpf oeq, %21, %24 : vector<8x128xf32>
    %c128_i32_10 = arith.constant 128 : i32
    %26 = vector.broadcast %c128_i32_10 : i32 to vector<8x128xi32>
    %27 = arith.select %25, %5, %26 : vector<8x128xi1>, vector<8x128xi32>
    %cst_11 = arith.constant dense<2147483647> : vector<8xi32>
    %28 = vector.multi_reduction <minsi>, %27, %cst_11 [1] : vector<8x128xi32> to vector<8xi32>
    %29 = vector.shape_cast %28 : vector<8xi32> to vector<8x1xi32>
    %30 = arith.subf %11, %11 : vector<8x1xf32>
    %31 = math.exp %30 : vector<8x1xf32>
    %32 = arith.subf %23, %11 : vector<8x1xf32>
    %33 = math.exp %32 : vector<8x1xf32>
    %34 = arith.addf %31, %33 : vector<8x1xf32>
    %35 = tpu.reciprocal %34 : vector<8x1xf32> -> vector<8x1xf32>
    %36 = tpu.iota {dimensions = array<i32: 1>} : vector<8x128xi32>
    %cst_12 = arith.constant 0.000000e+00 : f32
    %37 = vector.broadcast %cst_12 : f32 to vector<8x128xf32>
    %c0_i32 = arith.constant 0 : i32
    %38 = vector.broadcast %c0_i32 : i32 to vector<8x128xi32>
    %39 = arith.cmpi eq, %36, %38 : vector<8x128xi32>
    %40 = arith.mulf %31, %35 : vector<8x1xf32>
    %41 = vector.shape_cast %40 : vector<8x1xf32> to vector<8x1xf32>
    %42 = vector.broadcast %41 : vector<8x1xf32> to vector<8x128xf32>
    %43 = arith.select %39, %42, %37 : vector<8x128xi1>, vector<8x128xf32>
    %c2_i32 = arith.constant 2 : i32
    %44 = vector.broadcast %c2_i32 : i32 to vector<8x128xi32>
    %45 = arith.cmpi eq, %36, %44 : vector<8x128xi32>
    %46 = arith.sitofp %17 : vector<8x1xi32> to vector<8x1xf32>
    %47 = vector.shape_cast %46 : vector<8x1xf32> to vector<8x1xf32>
    %48 = vector.broadcast %47 : vector<8x1xf32> to vector<8x128xf32>
    %49 = arith.select %45, %48, %43 : vector<8x128xi1>, vector<8x128xf32>
    %c1_i32 = arith.constant 1 : i32
    %50 = vector.broadcast %c1_i32 : i32 to vector<8x128xi32>
    %51 = arith.cmpi eq, %36, %50 : vector<8x128xi32>
    %52 = arith.mulf %33, %35 : vector<8x1xf32>
    %53 = vector.shape_cast %52 : vector<8x1xf32> to vector<8x1xf32>
    %54 = vector.broadcast %53 : vector<8x1xf32> to vector<8x128xf32>
    %55 = arith.select %51, %54, %49 : vector<8x128xi1>, vector<8x128xf32>
    %c3_i32 = arith.constant 3 : i32
    %56 = vector.broadcast %c3_i32 : i32 to vector<8x128xi32>
    %57 = arith.cmpi eq, %36, %56 : vector<8x128xi32>
    %58 = arith.sitofp %29 : vector<8x1xi32> to vector<8x1xf32>
    %59 = vector.shape_cast %58 : vector<8x1xf32> to vector<8x1xf32>
    %60 = vector.broadcast %59 : vector<8x1xf32> to vector<8x128xf32>
    %61 = arith.select %57, %60, %55 : vector<8x128xi1>, vector<8x128xf32>
    %c0_13 = arith.constant 0 : index
    %c0_14 = arith.constant 0 : index
    %62 = vector.load %arg4[%c0_13, %c0_14] : memref<8x128xf32, #tpu.memory_space<vmem>>, vector<8x128xf32>
    tpu.vector_store %arg4[%c0_13, %c0_14], %61 {strides = array<i32>} : memref<8x128xf32, #tpu.memory_space<vmem>>, vector<8x128xf32>,
    return
  }
  func.func @transform_0(%arg0: i32) -> (i32, i32) {
    %c0_i32 = arith.constant 0 : i32
    %c0_i32_0 = arith.constant 0 : i32
    return %arg0, %c0_i32 : i32, i32
  }
  func.func @transform_1(%arg0: i32) -> (i32, i32) {
    %c0_i32 = arith.constant 0 : i32
    %c0_i32_0 = arith.constant 0 : i32
    %c0_i32_1 = arith.constant 0 : i32
    return %c0_i32, %c0_i32_0 : i32, i32
  }
  func.func @transform_2(%arg0: i32) -> (i32, i32) {
    %c0_i32 = arith.constant 0 : i32
    %c0_i32_0 = arith.constant 0 : i32
    return %arg0, %c0_i32 : i32, i32
  }
  func.func @transform_3(%arg0: i32) -> (i32, i32) {
    %c0_i32 = arith.constant 0 : i32
    %c0_i32_0 = arith.constant 0 : i32
    return %arg0, %c0_i32 : i32, i32
  }
}

</mosaic_0001>

<llo_original>
// kernel: tpu_custom_call.1
$region0: #{tpu_custom_call.1}
  #allocation0 [shape = 'u32[]', space=smem, size = 0x4, offset = 0x4, fixed_abs, tag = 'smem constant byte address 0x4 - core index']
  #allocation1 [shape = 'u32[144,128]{1,0:T(1,128)}', space=vmem, size = 0x12000, scoped, tag = 'internal scratch']
  %s0 = inlined_call_operand.hbm [shape: f32[16,32], index: 0, kind: input, shape index: {}]
  %s1 = inlined_call_operand.hbm [shape: bf16[32,128], index: 1, kind: input, shape index: {}]
  %s2 = inlined_call_operand.hbm [shape: f32[16,128], index: 2, kind: output, shape index: {0}]
  %s3 = inlined_call_operand.hbm [shape: f32[16,128], index: 3, kind: output, shape index: {1}]
  %4 = xla_tuple %s2, %s3
  %s5 = sld [smem:[#allocation0]]
  $region57: #{tpu_custom_call.1} parent=0
    _
  %s7 = ssub.s32 1, %s5
  %s8 = scalar_select 0, %s7, %s5
  $region1: #{tpu_custom_call.1} parent=0
    #allocation2 [shape = 'u8[8192]{0}', space=vmem, size = 0x2000, scoped, tag = 'input window, operand 0']
    #allocation3 [shape = 's32[2]{0}', space=sflag, size = 0x8, scoped, tag = 'scoped memory for tpu_custom_call.1']
    #allocation4 [shape = 's32[2]{0}', space=sflag, size = 0x8, scoped, tag = 'scoped memory for tpu_custom_call.1']
    #allocation5 [shape = 'u8[8192]{0}', space=vmem, size = 0x2000, scoped, tag = 'input window, operand 1, single buffered']
    #allocation6 [shape = 's32[1]{0}', space=sflag, size = 0x4, scoped, tag = 'scoped memory for tpu_custom_call.1']
    #allocation7 [shape = 'u8[8192]{0}', space=vmem, size = 0x2000, scoped, tag = 'output window, operand 0']
    #allocation8 [shape = 'u8[8192]{0}', space=vmem, size = 0x2000, scoped, tag = 'output window, operand 1']
    #allocation9 [shape = 's32[2]{0}', space=sflag, size = 0x8, scoped, tag = 'scoped memory for tpu_custom_call.1']
    %9 = vsyncpa [#allocation3], 0
    %s10 = scalar_lea.sflag [#allocation3], 1
    %11 = vsyncpa %s10, 0
    %12 = vsyncpa [#allocation6], 0
    %13 = vsyncpa [#allocation4], 0
    %s14 = scalar_lea.sflag [#allocation4], 1
    %15 = vsyncpa %s14, 0
    %16 = vsyncpa [#allocation9], 0
    %s17 = scalar_lea.sflag [#allocation9], 1
    %18 = vsyncpa %s17, 0
    loop: start=0, step=1, limit=4
    $region2: #{tpu_custom_call.1} parent=1 // loop_pre_header
      _
    $region3: #{tpu_custom_call.1} parent=1 // loop_header
      %s20 = sphi 0, %s24
      %p21 = scmp.ge.s32.totalorder %s20, 4
      %s30 = sphi 0, %s32
      %s33 = sphi 0, %s30
      %s34 = sphi 0, %s33
      %s50 = sphi 0, %s34
      %s54 = sphi 0, %s54
      %s56 = sphi 0, %s54
      %s57 = sphi 0, %s56
      %s71 = sphi 0, %s57
      %s77 = sphi 0, %s79
      %s80 = sphi 0, %s77
      %s81 = sphi 0, %s80
      %s97 = sphi 0, %s81
      %s103 = sphi 0, %s105
      %s106 = sphi 0, %s103
      %s107 = sphi 0, %s106
      %s123 = sphi 0, %s107
    $region4: #{tpu_custom_call.1} parent=1 // loop_header_branch
      %23 = sbr.rel (%p21) target = $region8
    $region5: #{tpu_custom_call.1} parent=1 // loop_body
      %s25 = ssub.s32 %s20, 1
      %s26 = ssub.s32 %s20, 2
      %s27 = sadd.s32 %s20, 1
      %s28 = ssub.s32 %s20, %s27
      %p29 = scmp.eq.s32.totalorder %s28, 0
      %s31 = sadd.s32 %s30, 1
      %s32 = scalar_select %p29, %s30, %s31
      %p35 = pneg %p29
      %p36 = scmp.eq.s32.totalorder %s20, 1
      %p37 = por %p35, %p36
      %p38 = scmp.ne.s32.totalorder %s30, %s33
      %p39 = scmp.eq.s32.totalorder %s20, 0
      %p40 = por %p38, %p39
      %p41 = scmp.ne.s32.totalorder %s30, %s33
      %p42 = scmp.eq.s32.totalorder %s25, 1
      %p43 = por %p41, %p42
      %p44 = scmp.ne.s32.totalorder %s33, %s34
      %p45 = scmp.eq.s32.totalorder %s25, 0
      %p46 = por %p44, %p45
      %p47 = scmp.ne.s32.totalorder %s33, %s34
      %p48 = scmp.eq.s32.totalorder %s26, 1
      %p49 = por %p47, %p48
      %p51 = scmp.ne.s32.totalorder %s34, %s50
      %p52 = scmp.eq.s32.totalorder %s26, 0
      %p53 = por %p51, %p52
      %s55 = sadd.s32 %s54, 1
      %p58 = scmp.eq.s32.totalorder %s20, 1
      %p59 = scmp.ne.s32.totalorder %s54, %s56
      %p60 = scmp.eq.s32.totalorder %s20, 0
      %p61 = por %p59, %p60
      %p62 = scmp.ne.s32.totalorder %s54, %s56
      %p63 = scmp.eq.s32.totalorder %s25, 1
      %p64 = por %p62, %p63
      %p65 = scmp.ne.s32.totalorder %s56, %s57
      %p66 = scmp.eq.s32.totalorder %s25, 0
      %p67 = por %p65, %p66
      %p68 = scmp.ne.s32.totalorder %s56, %s57
      %p69 = scmp.eq.s32.totalorder %s26, 1
      %p70 = por %p68, %p69
      %p72 = scmp.ne.s32.totalorder %s57, %s71
      %p73 = scmp.eq.s32.totalorder %s26, 0
      %p74 = por %p72, %p73
      %s75 = ssub.s32 %s20, %s27
      %p76 = scmp.eq.s32.totalorder %s75, 0
      %s78 = sadd.s32 %s77, 1
      %s79 = scalar_select %p76, %s77, %s78
      %p82 = pneg %p76
      %p83 = scmp.eq.s32.totalorder %s20, 1
      %p84 = por %p82, %p83
      %p85 = scmp.ne.s32.totalorder %s77, %s80
      %p86 = scmp.eq.s32.totalorder %s20, 0
      %p87 = por %p85, %p86
      %p88 = scmp.ne.s32.totalorder %s77, %s80
      %p89 = scmp.eq.s32.totalorder %s25, 1
      %p90 = por %p88, %p89
      %p91 = scmp.ne.s32.totalorder %s80, %s81
      %p92 = scmp.eq.s32.totalorder %s25, 0
      %p93 = por %p91, %p92
      %p94 = scmp.ne.s32.totalorder %s80, %s81
      %p95 = scmp.eq.s32.totalorder %s26, 1
      %p96 = por %p94, %p95
      %p98 = scmp.ne.s32.totalorder %s81, %s97
      %p99 = scmp.eq.s32.totalorder %s26, 0
      %p100 = por %p98, %p99
      %s101 = ssub.s32 %s20, %s27
      %p102 = scmp.eq.s32.totalorder %s101, 0
      %s104 = sadd.s32 %s103, 1
      %s105 = scalar_select %p102, %s103, %s104
      %p108 = pneg %p102
      %p109 = scmp.eq.s32.totalorder %s20, 1
      %p110 = por %p108, %p109
      %p111 = scmp.ne.s32.totalorder %s103, %s106
      %p112 = scmp.eq.s32.totalorder %s20, 0
      %p113 = por %p111, %p112
      %p114 = scmp.ne.s32.totalorder %s103, %s106
      %p115 = scmp.eq.s32.totalorder %s25, 1
      %p116 = por %p114, %p115
      %p117 = scmp.ne.s32.totalorder %s106, %s107
      %p118 = scmp.eq.s32.totalorder %s25, 0
      %p119 = por %p117, %p118
      %p120 = scmp.ne.s32.totalorder %s106, %s107
      %p121 = scmp.eq.s32.totalorder %s26, 1
      %p122 = por %p120, %p121
      %p124 = scmp.ne.s32.totalorder %s107, %s123
      %p125 = scmp.eq.s32.totalorder %s26, 0
      %p126 = por %p124, %p125
      %p127 = scmp.le.s32.totalorder 1, %s20
      %p128 = scmp.lt.s32.totalorder %s20, 3
      %p129 = pnand %p127, %p128
      %p130 = pneg %p129
      // Predicated region
      $region9: #{tpu_custom_call.1} parent=5 // pred_check
        _
      $region10: #{tpu_custom_call.1} parent=5 // pred_check_branch
        %132 = sbr.rel (%p129) target = $region12
      $region11: #{tpu_custom_call.1} parent=5 // pred_region
        %s133 = ssub.s32 %s20, 1
        // Predicated region
        $region13: #{tpu_custom_call.1} parent=11 // pred_check
          %p134 = pneg %p67
        $region14: #{tpu_custom_call.1} parent=11 // pred_check_branch
          %136 = sbr.rel (%p134) target = $region16
        $region15: #{tpu_custom_call.1} parent=11 // pred_region
          %s138 = ssub.s32 256, 256
          %139 = vsyncadd [#allocation6], %s138
          %s140 = sshll.u32 [#allocation5], 4
          %s141 = int_to_ptr.vmem [resolvable:$true] %s140
          %146 = dma.hbm_to_vmem [thread:$0]  %s1, 256, %s141, [#allocation6], 64, 64, 4
        $region16: #{tpu_custom_call.1} parent=11 // pred_fallthru
          _
      $region12: #{tpu_custom_call.1} parent=5 // pred_fallthru
        _
      %p147 = scmp.lt.s32.totalorder %s20, 2
      // Predicated region
      $region17: #{tpu_custom_call.1} parent=5 // pred_check
        %p148 = pneg %p147
      $region18: #{tpu_custom_call.1} parent=5 // pred_check_branch
        %150 = sbr.rel (%p148) target = $region20
      $region19: #{tpu_custom_call.1} parent=5 // pred_region
        // Predicated region
        $region21: #{tpu_custom_call.1} parent=19 // pred_check
          %p151 = pneg %p40
        $region22: #{tpu_custom_call.1} parent=19 // pred_check_branch
          %153 = sbr.rel (%p151) target = $region24
        $region23: #{tpu_custom_call.1} parent=19 // pred_region
          %s154 = sand.u32 %s30, 1
          %s155 = scalar_lea.sflag [#allocation3], %s154
          %s156 = sand.u32 %s30, 1
          %s157 = smul.addr %s156, 8
          %s158 = scalar_lea.vmem [#allocation2], %s157
          %s160 = ssub.s32 128, 128
          %161 = vsyncadd %s155, %s160
          %s162 = smul.addr %s20, 128
          %s163 = scalar_lea.hbm %s0, %s162
          %s165 = sshll.u32 %s158, 4
          %s166 = int_to_ptr.vmem [resolvable:$true] %s165
          %168 = dma.hbm_to_vmem [thread:$0]  %s163, 128, %s166, %s155
        $region24: #{tpu_custom_call.1} parent=19 // pred_fallthru
          _
      $region20: #{tpu_custom_call.1} parent=5 // pred_fallthru
        _
      %p169 = scmp.le.s32.totalorder 1, %s20
      %p170 = scmp.lt.s32.totalorder %s20, 3
      %p171 = pnand %p169, %p170
      %p172 = pneg %p171
      // Predicated region
      $region25: #{tpu_custom_call.1} parent=5 // pred_check
        _
      $region26: #{tpu_custom_call.1} parent=5 // pred_check_branch
        %174 = sbr.rel (%p171) target = $region28
      $region27: #{tpu_custom_call.1} parent=5 // pred_region
        %s175 = ssub.s32 %s20, 1
        %s176 = sand.u32 %s33, 1
        %s177 = scalar_lea.sflag [#allocation3], %s176
        %s178 = sand.u32 %s33, 1
        %s179 = smul.addr %s178, 8
        %s180 = scalar_lea.vmem [#allocation2], %s179
        // Predicated region
        $region29: #{tpu_custom_call.1} parent=27 // pred_check
          %p181 = pneg %p46
        $region30: #{tpu_custom_call.1} parent=27 // pred_check_branch
          %183 = sbr.rel (%p181) target = $region32
        $region31: #{tpu_custom_call.1} parent=27 // pred_region
          %184 = dma.done %s177, 128
        $region32: #{tpu_custom_call.1} parent=27 // pred_fallthru
          _
        // Predicated region
        $region33: #{tpu_custom_call.1} parent=27 // pred_check
          %p185 = pneg %p67
        $region34: #{tpu_custom_call.1} parent=27 // pred_check_branch
          %187 = sbr.rel (%p185) target = $region36
        $region35: #{tpu_custom_call.1} parent=27 // pred_region
          %188 = dma.done [#allocation6], 256
        $region36: #{tpu_custom_call.1} parent=27 // pred_fallthru
          _
        %s189 = sand.u32 %s33, 1
        %s190 = scalar_lea.sflag [#allocation3], %s189
        %s191 = sand.u32 %s33, 1
        %s192 = smul.addr %s191, 8
        %s193 = scalar_lea.vmem [#allocation2], %s192
        %p194 = pneg %p46
        %p195 = pneg %p43
        %p196 = pneg %p67
        %p197 = pneg %p64
        %p198 = pneg %p93
        %p199 = pneg %p90
        %s200 = sand.u32 %s80, 1
        %s201 = scalar_lea.sflag [#allocation4], %s200
        %s202 = sand.u32 %s80, 1
        %s203 = smul.addr %s202, 8
        %s204 = scalar_lea.vmem [#allocation7], %s203
        %p205 = pneg %p119
        %p206 = pneg %p116
        %s207 = sand.u32 %s106, 1
        %s208 = scalar_lea.sflag [#allocation9], %s207
        %s209 = sand.u32 %s106, 1
        %s210 = smul.addr %s209, 8
        %s211 = scalar_lea.vmem [#allocation8], %s210
        %v213 = vld [vmem:[%s180] sm:$0xff]
        %v214 = vpack.c.bf16 %v213, %v213
        %v215 = vld [vmem:[#allocation5] sm:$0xf]
        %v216 = vld [vmem:[#allocation5 + $0x4] sm:$0xf]
        %v217 = vld [vmem:[#allocation5 + $0x8] sm:$0xf]
        %v218 = vld [vmem:[#allocation5 + $0xc] sm:$0xf]
        %v223 = vunpack.c.l.b16 %v215
        %v224 = vunpack.c.l.b16 %v216
        %v225 = vunpack.c.l.b16 %v217
        %v226 = vunpack.c.l.b16 %v218
        %v227 = vpack.c.b16 %v224, %v223
        %v228 = vpack.c.b16 %v226, %v225
        %vm231 = vcmask 261120
        %v233 = vsel %vm231, %v214, 0
        %235 = vmatprep.subr.bf16.mxu0 0
        %236 = vmatpush1.bf16.msra.mxu0 %v227
        %237 = vmatprep.subr.bf16.mxu0 0
        %238 = vmatpush1.bf16.msra.mxu0 %v228
        %239 = vmatprep.subr.bf16.mxu0 0
        %240 = vmatpush1.bf16.msra.mxu0 0
        %241 = vmatprep.subr.bf16.mxu0 0
        %242 = vmatpush1.bf16.msra.mxu0 0
        %243 = vmatprep.subr.bf16.mxu0 0
        %244 = vmatpush1.bf16.msra.mxu0 0
        %245 = vmatprep.subr.bf16.mxu0 0
        %246 = vmatpush1.bf16.msra.mxu0 0
        %247 = vmatprep.subr.bf16.mxu0 0
        %248 = vmatpush1.bf16.msra.mxu0 0
        %249 = vmatprep.subr.bf16.mxu0 0
        %250 = vmatpush1.bf16.msra.mxu0 0
        %251 = vmatprep.subr.bf16.mxu0 0
        %252 = vmatpush1.bf16.msra.mxu0 0
        %253 = vmatprep.subr.bf16.mxu0 0
        %254 = vmatpush1.bf16.msra.mxu0 0
        %255 = vmatprep.subr.bf16.mxu0 0
        %256 = vmatpush1.bf16.msra.mxu0 0
        %257 = vmatprep.subr.bf16.mxu0 0
        %258 = vmatpush1.bf16.msra.mxu0 0
        %259 = vmatprep.subr.bf16.mxu0 0
        %260 = vmatpush1.bf16.msra.mxu0 0
        %261 = vmatprep.subr.bf16.mxu0 0
        %262 = vmatpush1.bf16.msra.mxu0 0
        %263 = vmatprep.subr.bf16.mxu0 0
        %264 = vmatpush1.bf16.msra.mxu0 0
        %265 = vmatprep.subr.bf16.mxu0 0
        %266 = vmatpush1.bf16.msra.mxu0 0
        %267 = vmatprep.mubr.bf16.mxu0 0
        %268 = vmatmul.mubr.bf16.gmra.mrb[0].mxu0 %v233
        %v269 = vpop.f32.mrb[0].mxu0
        %v270 = vadd.f32 0.0, %v269
        %v271 = vpop.f32.mrb[0].mxu0
        %v272 = vpop.f32.mrb[0].mxu0
        %v273 = vpop.f32.mrb[0].mxu0
        %274 = vdwg.mxu0
        %275 = vst [vmem:[%s204] sm:$0xff] %v270
        %v276 = vlaneseq
        %v277 = vand.u32 %v276, 127
        %vm278 = vcmp.lt.s32.totalorder %v277, 8
        %v279 = vsel %vm278, %v270, -inf
        %280 = vmax.xlane.f32.xlu0 %v279
        %v281 = vpop.xlane.xlu0 %280
        %vm282 = vcmp.eq.f32.partialorder %v279, %v281
        %v283 = vsel %vm282, %v277, 128
        %v284 = vand.u32 %v283, 65535
        %v285 = vshra.s32 %v283, 16
        %v286 = vcvt.s32.f32 %v284
        %v287 = vcvt.s32.f32 %v285
        %288 = vmin.xlane.f32.xlu0 %v287
        %v289 = vpop.xlane.xlu0 %288
        %vm290 = vcmp.eq.f32.partialorder %v287, %v289
        %v291 = vsel %vm290, %v286, inf
        %292 = vmin.xlane.f32.xlu0 %v291
        %v293 = vpop.xlane.xlu0 %292
        %v294 = vcvt.f32.s32 %v293
        %v295 = vcvt.f32.s32 %v289
        %v296 = vshll.u32 %v295, 16
        %v297 = vadd.s32 %v296, %v294
        %vm298 = vcmp.eq.s32.totalorder %v277, %v297
        %v299 = vsel %vm298, -inf, %v279
        %300 = vmax.xlane.f32.xlu0 %v299
        %v301 = vpop.xlane.xlu0 %300
        %vm302 = vcmp.eq.f32.partialorder %v299, %v301
        %v303 = vsel %vm302, %v277, 128
        %v304 = vand.u32 %v303, 65535
        %v305 = vshra.s32 %v303, 16
        %v306 = vcvt.s32.f32 %v304
        %v307 = vcvt.s32.f32 %v305
        %308 = vmin.xlane.f32.xlu0 %v307
        %v309 = vpop.xlane.xlu0 %308
        %vm310 = vcmp.eq.f32.partialorder %v307, %v309
        %v311 = vsel %vm310, %v306, inf
        %312 = vmin.xlane.f32.xlu0 %v311
        %v313 = vpop.xlane.xlu0 %312
        %v314 = vcvt.f32.s32 %v313
        %v315 = vcvt.f32.s32 %v309
        %v316 = vshll.u32 %v315, 16
        %v317 = vadd.s32 %v316, %v314
        %v318 = vsub.f32 %v281, %v281
        %v319 = vmul.f32 %v318, 1.442695
        %v320 = vpow.pop %v319
        %v321 = vsub.f32 %v301, %v281
        %v322 = vmul.f32 %v321, 1.442695
        %v323 = vpow.pop %v322
        %v324 = vadd.f32 %v320, %v323
        %v325 = vrcp.pop %v324
        %vm326 = vcmp.eq.s32.totalorder %v277, 0
        %v327 = vmul.f32 %v320, %v325
        %v328 = vsel %vm326, %v327, 0.0
        %vm329 = vcmp.eq.s32.totalorder %v277, 2
        %v330 = vcvt.s32.f32 %v297
        %v331 = vsel %vm329, %v330, %v328
        %vm332 = vcmp.eq.s32.totalorder %v277, 1
        %v333 = vmul.f32 %v323, %v325
        %v334 = vsel %vm332, %v333, %v331
        %vm335 = vcmp.eq.s32.totalorder %v277, 3
        %v336 = vcvt.s32.f32 %v317
        %v337 = vsel %vm335, %v336, %v334
        %338 = vst [vmem:[%s211] sm:$0xff] %v337
        %s339 = sand.u32 %s80, 1
        %s340 = scalar_lea.sflag [#allocation4], %s339
        %s341 = sand.u32 %s80, 1
        %s342 = smul.addr %s341, 8
        %s343 = scalar_lea.vmem [#allocation7], %s342
        %s344 = sand.u32 %s106, 1
        %s345 = scalar_lea.sflag [#allocation9], %s344
        %s346 = sand.u32 %s106, 1
        %s347 = smul.addr %s346, 8
        %s348 = scalar_lea.vmem [#allocation8], %s347
        // Predicated region
        $region37: #{tpu_custom_call.1} parent=27 // pred_check
          %p349 = pneg %p90
        $region38: #{tpu_custom_call.1} parent=27 // pred_check_branch
          %351 = sbr.rel (%p349) target = $region40
        $region39: #{tpu_custom_call.1} parent=27 // pred_region
          %s353 = ssub.s32 128, 128
          %354 = vsyncadd %s340, %s353
          %s355 = smul.addr %s25, 128
          %s356 = scalar_lea.hbm %s2, %s355
          %s358 = sshll.u32 %s343, 4
          %s359 = int_to_ptr.vmem [resolvable:$true] %s358
          %361 = dma.vmem_to_hbm [thread:$0]  %s359, 128, %s356, %s340
        $region40: #{tpu_custom_call.1} parent=27 // pred_fallthru
          _
        // Predicated region
        $region41: #{tpu_custom_call.1} parent=27 // pred_check
          %p362 = pneg %p116
        $region42: #{tpu_custom_call.1} parent=27 // pred_check_branch
          %364 = sbr.rel (%p362) target = $region44
        $region43: #{tpu_custom_call.1} parent=27 // pred_region
          %s366 = ssub.s32 128, 128
          %367 = vsyncadd %s345, %s366
          %s368 = smul.addr %s25, 128
          %s369 = scalar_lea.hbm %s3, %s368
          %s371 = sshll.u32 %s348, 4
          %s372 = int_to_ptr.vmem [resolvable:$true] %s371
          %374 = dma.vmem_to_hbm [thread:$0]  %s372, 128, %s369, %s345
        $region44: #{tpu_custom_call.1} parent=27 // pred_fallthru
          _
      $region28: #{tpu_custom_call.1} parent=5 // pred_fallthru
        _
      %p375 = scmp.le.s32.totalorder 2, %s20
      // Predicated region
      $region45: #{tpu_custom_call.1} parent=5 // pred_check
        %p376 = pneg %p375
      $region46: #{tpu_custom_call.1} parent=5 // pred_check_branch
        %378 = sbr.rel (%p376) target = $region48
      $region47: #{tpu_custom_call.1} parent=5 // pred_region
        %s379 = ssub.s32 %s20, 2
        // Predicated region
        $region49: #{tpu_custom_call.1} parent=47 // pred_check
          %p380 = pneg %p96
        $region50: #{tpu_custom_call.1} parent=47 // pred_check_branch
          %382 = sbr.rel (%p380) target = $region52
        $region51: #{tpu_custom_call.1} parent=47 // pred_region
          %s383 = sand.u32 %s81, 1
          %s384 = scalar_lea.sflag [#allocation4], %s383
          %s385 = sand.u32 %s81, 1
          %s386 = smul.addr %s385, 8
          %s387 = scalar_lea.vmem [#allocation7], %s386
          %388 = dma.done %s384, 128
        $region52: #{tpu_custom_call.1} parent=47 // pred_fallthru
          _
        // Predicated region
        $region53: #{tpu_custom_call.1} parent=47 // pred_check
          %p389 = pneg %p122
        $region54: #{tpu_custom_call.1} parent=47 // pred_check_branch
          %391 = sbr.rel (%p389) target = $region56
        $region55: #{tpu_custom_call.1} parent=47 // pred_region
          %s392 = sand.u32 %s107, 1
          %s393 = scalar_lea.sflag [#allocation9], %s392
          %s394 = sand.u32 %s107, 1
          %s395 = smul.addr %s394, 8
          %s396 = scalar_lea.vmem [#allocation8], %s395
          %397 = dma.done %s393, 128
        $region56: #{tpu_custom_call.1} parent=47 // pred_fallthru
          _
      $region48: #{tpu_custom_call.1} parent=5 // pred_fallthru
        _
    $region6: #{tpu_custom_call.1} parent=1 // loop_footer
      %s24 = sadd.s32 1, %s20
    $region7: #{tpu_custom_call.1} parent=1 // loop_footer_branch
      %19 = sbr.rel target = $region3
    $region8: #{tpu_custom_call.1} parent=1 // loop_exit
      _
    %398 = vsyncpa [#allocation3], 1
    %s399 = scalar_lea.sflag [#allocation3], 1
    %400 = vsyncpa %s399, 1
    %401 = vsyncpa [#allocation6], 1
    %402 = vsyncpa [#allocation4], 1
    %s403 = scalar_lea.sflag [#allocation4], 1
    %404 = vsyncpa %s403, 1
    %405 = vsyncpa [#allocation9], 1
    %s406 = scalar_lea.sflag [#allocation9], 1
    %407 = vsyncpa %s406, 1

</llo_original>
